<compile_context>
chip_gen: v7x
topology: tpu7x:2x2x1
jax: 0.10.0
libtpu: 0.0.40
codegen_flags: <defaults>
</compile_context>

<pallas_src>
import functools
import math

import jax
import jax.numpy as jnp
from jax import lax
from jax.experimental import pallas as pl
from jax.experimental.pallas import tpu as pltpu


def _cdiv(a, b):
    return -(-a // b)


def _conv_taps_kernel(planes_ref, w_ref, b_ref, out_ref, *, tap_plan, cout, lanes, chunk):
    """One grid step = VALID stride-2 3x3 conv (Cin=1) for one block of images.

    planes_ref: [4, lanes + 128] f32 -- stride-2 phase planes; the lane axis packs the
                block's images contiguously as (image, h//2, w//2); the last 128 lanes
                are a shared zero tail so every static tap window (max shift Wh+1 <= 128)
                stays in bounds.
    w_ref:      [cout, 9]  f32 -- conv weights, tap-major (t = kh*3 + kw).
    b_ref:      [cout, 1]  f32 -- bias.
    out_ref:    [cout, lanes] f32 -- lane-dense output slab (last dim multiple of 128).
    """
    n_taps = len(tap_plan)

    # Hoisted once per grid step (kept out of the tap/chunk path): the 9 weight-column
    # loads + lane-broadcasts, and the bias broadcast (JAX does not CSE broadcasts).
    w_b = [jnp.broadcast_to(w_ref[:, t:t + 1], (cout, chunk)) for t in range(n_taps)]
    bias_b = jnp.broadcast_to(b_ref[...], (cout, chunk))

    # Static chunk loop over the lane axis: every iteration is independent and ends in
    # its own aligned, lane-dense store, so register live ranges stay bounded.
    for c in range(lanes // chunk):
        start = c * chunk

        def row(t, _start=start):
            p, s = tap_plan[t]
            # Fused im2col: each tap is a static shifted window of a phase plane that is
            # already resident in VMEM (no patches array ever touches HBM).
            return planes_ref[p:p + 1, _start + s:_start + s + chunk]       # [1, chunk]

        # 3 independent accumulation chains (instead of one 9-deep dependent chain);
        # the bias broadcast seeds the first chain so it costs no extra add.
        a0 = bias_b + w_b[0] * row(0)
        a0 = a0 + w_b[1] * row(1)
        a0 = a0 + w_b[2] * row(2)
        a1 = w_b[3] * row(3)
        a1 = a1 + w_b[4] * row(4)
        a1 = a1 + w_b[5] * row(5)
        a2 = w_b[6] * row(6)
        a2 = a2 + w_b[7] * row(7)
        a2 = a2 + w_b[8] * row(8)
        out_ref[:, start:start + chunk] = a0 + (a1 + a2)


def conv2d_s2_k3_nhwc(x_nhwc, w_oihw, bias):
    """VALID 3x3 stride-2 conv, Cin=1, NHWC in/out, PyTorch OIHW weights + bias."""
    N, H, W, Cin = x_nhwc.shape
    Cout, Cin_w, KH, KW = w_oihw.shape
    assert Cin == 1 and Cin_w == 1, "TorchConv has Cin == 1"
    assert KH == 3 and KW == 3
    stride = 2
    assert H % 2 == 0 and W % 2 == 0, "even spatial dims expected"
    Hh, Wh = H // 2, W // 2
    H_out = (H - KH) // stride + 1          # == Hh - 1
    W_out = (W - KW) // stride + 1          # == Wh - 1

    plane_elems = Hh * Wh                   # lanes used by one image in a phase plane
    # TODO(synk): generalize lane-packing for spatial sizes where (H/2)*(W/2) does not
    # divide 128, or where Wh + 1 > 128.
    assert 128 % plane_elems == 0, "geometry must pack into 128-lane groups"
    PAD_TAIL = 128                          # shared tail pad per block (covers max shift)
    assert Wh + 1 <= PAD_TAIL

    ipg = 128 // plane_elems                # images per 128-lane group
    n_groups = _cdiv(N, ipg)                # total 128-lane groups of work (M / 128)

    # Groups per grid step: target a ~1 MiB f32 output slab (64 groups -> 8192 lanes),
    # but keep >= 2 grid steps whenever there is enough work so both v7x TCs are used.
    GPB_TARGET = 64
    gpb = min(GPB_TARGET, max(1, _cdiv(n_groups, 2)))
    G = _cdiv(n_groups, gpb)                # grid steps
    L_BLK = gpb * 128                       # lanes per output block (lane-dense)
    CHUNK = 128 * math.gcd(gpb, 4)          # inner sub-tile (<= 512 lanes, divides L_BLK)
    Np = G * gpb * ipg                      # images after batch padding
    M_pad = G * L_BLK                       # padded output rows (= Np * plane_elems)

    # --- wrapper glue: one re-layout pass of x into per-block phase planes ----------
    # (no 9x im2col amplification; only a 128/L_BLK fractional tail pad per block).
    x3 = x_nhwc[..., 0].astype(jnp.float32)               # [N, H, W]
    if Np != N:
        x3 = jnp.pad(x3, ((0, Np - N), (0, 0), (0, 0)))
    # phase plane (rp, cp)[n, hh, ww] = x[n, 2*hh + rp, 2*ww + cp]
    x6 = x3.reshape(G, gpb * ipg, Hh, 2, Wh, 2)            # g, j, hh, rp, ww, cp
    x6 = jnp.transpose(x6, (0, 3, 5, 1, 2, 4))             # g, rp, cp, j, hh, ww
    planes = x6.reshape(G, 4, L_BLK)
    planes = jnp.pad(planes, ((0, 0), (0, 0), (0, PAD_TAIL)))   # [G, 4, L_BLK + 128]

    w_mat = w_oihw.reshape(Cout, KH * KW).astype(jnp.float32)   # tap-major (Cin == 1)
    b_mat = bias.reshape(Cout, 1).astype(jnp.float32)

    # tap (kh, kw) -> (phase plane rp*2+cp, lane shift (kh//2)*Wh + (kw//2))
    tap_plan = tuple(((kh % 2) * 2 + (kw % 2), (kh // 2) * Wh + (kw // 2))
                     for kh in range(KH) for kw in range(KW))

    kernel = functools.partial(_conv_taps_kernel, tap_plan=tap_plan,
                               cout=Cout, lanes=L_BLK, chunk=CHUNK)

    # Advisory cost: tiny FLOPs, memory-bound -> lets XLA overlap the wrapper
    # re-layout passes with this custom call.
    cost = pl.CostEstimate(
        flops=int(2 * len(tap_plan) * Cout * M_pad),
        transcendentals=0,
        bytes_accessed=int(planes.size * 4 + Cout * M_pad * 4 + w_mat.size * 4 + Cout * 4),
    )

    out = pl.pallas_call(
        kernel,
        out_shape=jax.ShapeDtypeStruct((Cout, M_pad), jnp.float32),
        grid=(G,),
        in_specs=[
            pl.BlockSpec((None, 4, L_BLK + PAD_TAIL), lambda g: (g, 0, 0)),  # planes
            pl.BlockSpec((Cout, KH * KW), lambda g: (0, 0)),                 # weights (const)
            pl.BlockSpec((Cout, 1), lambda g: (0, 0)),                       # bias (const)
        ],
        out_specs=pl.BlockSpec((Cout, L_BLK), lambda g: (0, g)),
        compiler_params=pltpu.CompilerParams(
            dimension_semantics=("parallel",)),     # shard image blocks across v7x cores
        cost_estimate=cost,
    )(planes, w_mat, b_mat)

    # --- un-pad / back to NHWC -------------------------------------------------------
    # TODO(synk): if a consumer can take the [Cout, M] channels-major layout directly,
    # drop this transpose -- it is a full extra HBM round trip of the 32-channel output.
    out = out.reshape(Cout, Np, Hh, Wh)
    out = jnp.transpose(out, (1, 2, 3, 0))                 # n, hh, ww, co
    return out[:N, :H_out, :W_out, :]


if __name__ == "__main__":
    # Deterministic parameter init, mirroring nn.init.constant_(param, c).
    constant_init = 0.1
    Cout, Cin, KH, KW = 32, 1, 3, 3
    w = jnp.full((Cout, Cin, KH, KW), constant_init, dtype=jnp.float32)   # OIHW
    b = jnp.full((Cout,), constant_init, dtype=jnp.float32)

    conv = jax.jit(conv2d_s2_k3_nhwc)

    def ref_conv(x):
        # XLA's conv == nn.Conv2d(1, 32, 3, stride=2) with VALID padding + bias.
        r = lax.conv_general_dilated(
            jnp.transpose(x, (0, 3, 1, 2)), w, window_strides=(2, 2), padding="VALID")
        return jnp.transpose(r, (0, 2, 3, 1)) + b.reshape(1, 1, 1, Cout)

    key = jax.random.PRNGKey(0)

    # Primary small case matching the module's forward (NHWC input, Cin=1).
    x = jax.random.normal(key, (2, 16, 16, 1), dtype=jnp.float32)
    out = jax.block_until_ready(conv(x, w, b))
    assert out.shape == (2, 7, 7, 32), out.shape
    assert jnp.allclose(out, ref_conv(x), atol=1e-5, rtol=1e-5), \
        float(jnp.max(jnp.abs(out - ref_conv(x))))

    # Also exercise the multi-block / multi-chunk / padded-batch paths.
    for n_extra in (13, 64):
        xe = jax.random.normal(jax.random.fold_in(key, n_extra),
                               (n_extra, 16, 16, 1), dtype=jnp.float32)
        oe = jax.block_until_ready(conv(xe, w, b))
        assert oe.shape == (n_extra, 7, 7, 32), oe.shape
        assert jnp.allclose(oe, ref_conv(xe), atol=1e-5, rtol=1e-5), \
            float(jnp.max(jnp.abs(oe - ref_conv(xe))))

    print("KERNEL_OK")
</pallas_src>

<mosaic_0001>
module attributes {stable_mosaic.version = 11 : i64} {
  func.func @_conv_taps_kernel(%arg0: i32, %arg1: memref<1x4x256xf32, #tpu.memory_space<vmem>>, %arg2: memref<32x9xf32, #tpu.memory_space<vmem>>, %arg3: memref<32x1xf32, #tpu.memory_space<vmem>>, %arg4: memref<32x128xf32, #tpu.memory_space<vmem>>) attributes {dimension_semantics = [#tpu.dimension_semantics<parallel>], iteration_bounds = array<i64: 1>, scalar_prefetch = 0 : i64, scratch_operands = 0 : i64, tpu.core_type = #tpu.core_type<tc>, window_params = [{transform_indices = @transform_0, window_bounds = array<i64: 1, 4, 256>}, {pipeline_mode = #tpu.pipeline_mode<synchronous>, transform_indices = @transform_1, window_bounds = array<i64: 32, 9>}, {pipeline_mode = #tpu.pipeline_mode<synchronous>, transform_indices = @transform_2, window_bounds = array<i64: 32, 1>}, {transform_indices = @transform_3, window_bounds = array<i64: 32, 128>}]} {
    %c0 = arith.constant 0 : index
    %c0_0 = arith.constant 0 : index
    %0 = vector.load %arg2[%c0, %c0_0] : memref<32x9xf32, #tpu.memory_space<vmem>>, vector<32x1xf32>
    %1 = vector.shape_cast %0 : vector<32x1xf32> to vector<32x1xf32>
    %2 = vector.broadcast %1 : vector<32x1xf32> to vector<32x128xf32>
    %c0_1 = arith.constant 0 : index
    %c1 = arith.constant 1 : index
    %3 = vector.load %arg2[%c0_1, %c1] : memref<32x9xf32, #tpu.memory_space<vmem>>, vector<32x1xf32>
    %4 = vector.shape_cast %3 : vector<32x1xf32> to vector<32x1xf32>
    %5 = vector.broadcast %4 : vector<32x1xf32> to vector<32x128xf32>
    %c0_2 = arith.constant 0 : index
    %c2 = arith.constant 2 : index
    %6 = vector.load %arg2[%c0_2, %c2] : memref<32x9xf32, #tpu.memory_space<vmem>>, vector<32x1xf32>
    %7 = vector.shape_cast %6 : vector<32x1xf32> to vector<32x1xf32>
    %8 = vector.broadcast %7 : vector<32x1xf32> to vector<32x128xf32>
    %c0_3 = arith.constant 0 : index
    %c3 = arith.constant 3 : index
    %9 = vector.load %arg2[%c0_3, %c3] : memref<32x9xf32, #tpu.memory_space<vmem>>, vector<32x1xf32>
    %10 = vector.shape_cast %9 : vector<32x1xf32> to vector<32x1xf32>
    %11 = vector.broadcast %10 : vector<32x1xf32> to vector<32x128xf32>
    %c0_4 = arith.constant 0 : index
    %c4 = arith.constant 4 : index
    %12 = vector.load %arg2[%c0_4, %c4] : memref<32x9xf32, #tpu.memory_space<vmem>>, vector<32x1xf32>
    %13 = vector.shape_cast %12 : vector<32x1xf32> to vector<32x1xf32>
    %14 = vector.broadcast %13 : vector<32x1xf32> to vector<32x128xf32>
    %c0_5 = arith.constant 0 : index
    %c5 = arith.constant 5 : index
    %15 = vector.load %arg2[%c0_5, %c5] : memref<32x9xf32, #tpu.memory_space<vmem>>, vector<32x1xf32>
    %16 = vector.shape_cast %15 : vector<32x1xf32> to vector<32x1xf32>
    %17 = vector.broadcast %16 : vector<32x1xf32> to vector<32x128xf32>
    %c0_6 = arith.constant 0 : index
    %c6 = arith.constant 6 : index
    %18 = vector.load %arg2[%c0_6, %c6] : memref<32x9xf32, #tpu.memory_space<vmem>>, vector<32x1xf32>
    %19 = vector.shape_cast %18 : vector<32x1xf32> to vector<32x1xf32>
    %20 = vector.broadcast %19 : vector<32x1xf32> to vector<32x128xf32>
    %c0_7 = arith.constant 0 : index
    %c7 = arith.constant 7 : index
    %21 = vector.load %arg2[%c0_7, %c7] : memref<32x9xf32, #tpu.memory_space<vmem>>, vector<32x1xf32>
    %22 = vector.shape_cast %21 : vector<32x1xf32> to vector<32x1xf32>
    %23 = vector.broadcast %22 : vector<32x1xf32> to vector<32x128xf32>
    %c0_8 = arith.constant 0 : index
    %c8 = arith.constant 8 : index
    %24 = vector.load %arg2[%c0_8, %c8] : memref<32x9xf32, #tpu.memory_space<vmem>>, vector<32x1xf32>
    %25 = vector.shape_cast %24 : vector<32x1xf32> to vector<32x1xf32>
    %26 = vector.broadcast %25 : vector<32x1xf32> to vector<32x128xf32>
    %c0_9 = arith.constant 0 : index
    %c0_10 = arith.constant 0 : index
    %27 = vector.load %arg3[%c0_9, %c0_10] : memref<32x1xf32, #tpu.memory_space<vmem>>, vector<32x1xf32>
    %28 = vector.shape_cast %27 : vector<32x1xf32> to vector<32x1xf32>
    %29 = vector.broadcast %28 : vector<32x1xf32> to vector<32x128xf32>
    %c0_11 = arith.constant 0 : index
    %c0_12 = arith.constant 0 : index
    %c0_13 = arith.constant 0 : index
    %30 = vector.load %arg1[%c0_11, %c0_12, %c0_13] : memref<1x4x256xf32, #tpu.memory_space<vmem>>, vector<1x1x128xf32>
    %31 = vector.shape_cast %30 : vector<1x1x128xf32> to vector<1x128xf32>
    %32 = vector.broadcast %31 : vector<1x128xf32> to vector<32x128xf32>
    %33 = arith.mulf %2, %32 : vector<32x128xf32>
    %34 = arith.addf %29, %33 : vector<32x128xf32>
    %c0_14 = arith.constant 0 : index
    %c1_15 = arith.constant 1 : index
    %c0_16 = arith.constant 0 : index
    %35 = vector.load %arg1[%c0_14, %c1_15, %c0_16] : memref<1x4x256xf32, #tpu.memory_space<vmem>>, vector<1x1x128xf32>
    %36 = vector.shape_cast %35 : vector<1x1x128xf32> to vector<1x128xf32>
    %37 = vector.broadcast %36 : vector<1x128xf32> to vector<32x128xf32>
    %38 = arith.mulf %5, %37 : vector<32x128xf32>
    %39 = arith.addf %34, %38 : vector<32x128xf32>
    %c0_17 = arith.constant 0 : index
    %c0_18 = arith.constant 0 : index
    %c1_19 = arith.constant 1 : index
    %40 = vector.load %arg1[%c0_17, %c0_18, %c1_19] : memref<1x4x256xf32, #tpu.memory_space<vmem>>, vector<1x1x128xf32>
    %41 = vector.shape_cast %40 : vector<1x1x128xf32> to vector<1x128xf32>
    %42 = vector.broadcast %41 : vector<1x128xf32> to vector<32x128xf32>
    %43 = arith.mulf %8, %42 : vector<32x128xf32>
    %44 = arith.addf %39, %43 : vector<32x128xf32>
    %c0_20 = arith.constant 0 : index
    %c2_21 = arith.constant 2 : index
    %c0_22 = arith.constant 0 : index
    %45 = vector.load %arg1[%c0_20, %c2_21, %c0_22] : memref<1x4x256xf32, #tpu.memory_space<vmem>>, vector<1x1x128xf32>
    %46 = vector.shape_cast %45 : vector<1x1x128xf32> to vector<1x128xf32>
    %47 = vector.broadcast %46 : vector<1x128xf32> to vector<32x128xf32>
    %48 = arith.mulf %11, %47 : vector<32x128xf32>
    %c0_23 = arith.constant 0 : index
    %c3_24 = arith.constant 3 : index
    %c0_25 = arith.constant 0 : index
    %49 = vector.load %arg1[%c0_23, %c3_24, %c0_25] : memref<1x4x256xf32, #tpu.memory_space<vmem>>, vector<1x1x128xf32>
    %50 = vector.shape_cast %49 : vector<1x1x128xf32> to vector<1x128xf32>
    %51 = vector.broadcast %50 : vector<1x128xf32> to vector<32x128xf32>
    %52 = arith.mulf %14, %51 : vector<32x128xf32>
    %53 = arith.addf %48, %52 : vector<32x128xf32>
    %c0_26 = arith.constant 0 : index
    %c2_27 = arith.constant 2 : index
    %c1_28 = arith.constant 1 : index
    %54 = vector.load %arg1[%c0_26, %c2_27, %c1_28] : memref<1x4x256xf32, #tpu.memory_space<vmem>>, vector<1x1x128xf32>
    %55 = vector.shape_cast %54 : vector<1x1x128xf32> to vector<1x128xf32>
    %56 = vector.broadcast %55 : vector<1x128xf32> to vector<32x128xf32>
    %57 = arith.mulf %17, %56 : vector<32x128xf32>
    %58 = arith.addf %53, %57 : vector<32x128xf32>
    %c0_29 = arith.constant 0 : index
    %c0_30 = arith.constant 0 : index
    %c8_31 = arith.constant 8 : index
    %59 = vector.load %arg1[%c0_29, %c0_30, %c8_31] : memref<1x4x256xf32, #tpu.memory_space<vmem>>, vector<1x1x128xf32>
    %60 = vector.shape_cast %59 : vector<1x1x128xf32> to vector<1x128xf32>
    %61 = vector.broadcast %60 : vector<1x128xf32> to vector<32x128xf32>
    %62 = arith.mulf %20, %61 : vector<32x128xf32>
    %c0_32 = arith.constant 0 : index
    %c1_33 = arith.constant 1 : index
    %c8_34 = arith.constant 8 : index
    %63 = vector.load %arg1[%c0_32, %c1_33, %c8_34] : memref<1x4x256xf32, #tpu.memory_space<vmem>>, vector<1x1x128xf32>
    %64 = vector.shape_cast %63 : vector<1x1x128xf32> to vector<1x128xf32>
    %65 = vector.broadcast %64 : vector<1x128xf32> to vector<32x128xf32>
    %66 = arith.mulf %23, %65 : vector<32x128xf32>
    %67 = arith.addf %62, %66 : vector<32x128xf32>
    %c0_35 = arith.constant 0 : index
    %c0_36 = arith.constant 0 : index
    %c9 = arith.constant 9 : index
    %68 = vector.load %arg1[%c0_35, %c0_36, %c9] : memref<1x4x256xf32, #tpu.memory_space<vmem>>, vector<1x1x128xf32>
    %69 = vector.shape_cast %68 : vector<1x1x128xf32> to vector<1x128xf32>
    %70 = vector.broadcast %69 : vector<1x128xf32> to vector<32x128xf32>
    %71 = arith.mulf %26, %70 : vector<32x128xf32>
    %72 = arith.addf %67, %71 : vector<32x128xf32>
    %73 = arith.addf %58, %72 : vector<32x128xf32>
    %74 = arith.addf %44, %73 : vector<32x128xf32>
    %c0_37 = arith.constant 0 : index
    %c0_38 = arith.constant 0 : index
    %75 = vector.load %arg4[%c0_37, %c0_38] : memref<32x128xf32, #tpu.memory_space<vmem>>, vector<32x128xf32>
    tpu.vector_store %arg4[%c0_37, %c0_38], %74 {strides = array<i32>} : memref<32x128xf32, #tpu.memory_space<vmem>>, vector<32x128xf32>,
    return
  }
  func.func @transform_0(%arg0: i32) -> (i32, i32, i32) {
    %c0_i32 = arith.constant 0 : i32
    %c0_i32_0 = arith.constant 0 : i32
    %c0_i32_1 = arith.constant 0 : i32
    return %arg0, %c0_i32, %c0_i32_0 : i32, i32, i32
  }
  func.func @transform_1(%arg0: i32) -> (i32, i32) {
    %c0_i32 = arith.constant 0 : i32
    %c0_i32_0 = arith.constant 0 : i32
    %c0_i32_1 = arith.constant 0 : i32
    return %c0_i32, %c0_i32_0 : i32, i32
  }
  func.func @transform_2(%arg0: i32) -> (i32, i32) {
    %c0_i32 = arith.constant 0 : i32
    %c0_i32_0 = arith.constant 0 : i32
    %c0_i32_1 = arith.constant 0 : i32
    return %c0_i32, %c0_i32_0 : i32, i32
  }
  func.func @transform_3(%arg0: i32) -> (i32, i32) {
    %c0_i32 = arith.constant 0 : i32
    %c0_i32_0 = arith.constant 0 : i32
    return %c0_i32, %arg0 : i32, i32
  }
}

</mosaic_0001>

<llo_original>
// kernel: squeeze.1
$region0: #{squeeze.1}
  %s0 = inlined_call_operand.vmem [shape: f32[2,16,16], index: 0, kind: input, shape index: {}]
  %s1 = inlined_call_operand.vmem [shape: f32[1,2,8,2,8,2], index: 1, kind: output, shape index: {}]
  %v2 = vld [vmem:[%s0] sm:$0xff]
  %vm3 = vcmask 15360
  %4 = vst.msk [vmem:[%s1] ss:$8 sm:$0xf] %vm3, %v2
  %5 = vst.msk [vmem:[%s1] ss:$8 sm:$0xf0] %vm3, %v2
  %s6 = scalar_lea.vmem %s0, 8
  %v7 = vld [vmem:[%s6] sm:$0xff]
  %vm8 = vcmask 15360
  %s9 = scalar_lea.vmem %s1, 64
  %10 = vst.msk [vmem:[%s9] ss:$8 sm:$0xf] %vm8, %v7
  %s11 = scalar_lea.vmem %s1, 64
  %12 = vst.msk [vmem:[%s11] ss:$8 sm:$0xf0] %vm8, %v7
  %s13 = scalar_lea.vmem %s0, 16
  %v14 = vld [vmem:[%s13] sm:$0xff]
  %vm15 = vcmask 15360
  %s16 = scalar_lea.vmem %s1, 128
  %17 = vst.msk [vmem:[%s16] ss:$8 sm:$0xf] %vm15, %v14
  %s18 = scalar_lea.vmem %s1, 128
  %19 = vst.msk [vmem:[%s18] ss:$8 sm:$0xf0] %vm15, %v14
  %s20 = scalar_lea.vmem %s0, 24
  %v21 = vld [vmem:[%s20] sm:$0xff]
  %vm22 = vcmask 15360
  %s23 = scalar_lea.vmem %s1, 192
  %24 = vst.msk [vmem:[%s23] ss:$8 sm:$0xf] %vm22, %v21
  %s25 = scalar_lea.vmem %s1, 192
  %26 = vst.msk [vmem:[%s25] ss:$8 sm:$0xf0] %vm22, %v21
  %v27 = vld [vmem:[%s0] sm:$0xff]
  %28 = vrot.lane.b32.xlu0 %v27, 126
  %v29 = vpop.permute.xlu0 %28
  %vm30 = vcmask 15360
  %s31 = scalar_lea.vmem %s1, 1
  %32 = vst.msk [vmem:[%s31] ss:$8 sm:$0xf] %vm30, %v29
  %s33 = scalar_lea.vmem %s1, 1
  %34 = vst.msk [vmem:[%s33] ss:$8 sm:$0xf0] %vm30, %v29
  %s35 = scalar_lea.vmem %s0, 8
  %v36 = vld [vmem:[%s35] sm:$0xff]
  %37 = vrot.lane.b32.xlu0 %v36, 126
  %v38 = vpop.permute.xlu0 %37
  %vm39 = vcmask 15360
  %s40 = scalar_lea.vmem %s1, 65
  %41 = vst.msk [vmem:[%s40] ss:$8 sm:$0xf] %vm39, %v38
  %s42 = scalar_lea.vmem %s1, 65
  %43 = vst.msk [vmem:[%s42] ss:$8 sm:$0xf0] %vm39, %v38
  %s44 = scalar_lea.vmem %s0, 16
  %v45 = vld [vmem:[%s44] sm:$0xff]
  %46 = vrot.lane.b32.xlu0 %v45, 126
  %v47 = vpop.permute.xlu0 %46
  %vm48 = vcmask 15360
  %s49 = scalar_lea.vmem %s1, 129
  %50 = vst.msk [vmem:[%s49] ss:$8 sm:$0xf] %vm48, %v47
  %s51 = scalar_lea.vmem %s1, 129
  %52 = vst.msk [vmem:[%s51] ss:$8 sm:$0xf0] %vm48, %v47
  %s53 = scalar_lea.vmem %s0, 24
  %v54 = vld [vmem:[%s53] sm:$0xff]
  %55 = vrot.lane.b32.xlu0 %v54, 126
  %v56 = vpop.permute.xlu0 %55
  %vm57 = vcmask 15360
  %s58 = scalar_lea.vmem %s1, 193
  %59 = vst.msk [vmem:[%s58] ss:$8 sm:$0xf] %vm57, %v56
  %s60 = scalar_lea.vmem %s1, 193
  %61 = vst.msk [vmem:[%s60] ss:$8 sm:$0xf0] %vm57, %v56
  %v62 = vld [vmem:[%s0] sm:$0xff]
  %63 = vrot.lane.b32.xlu0 %v62, 124
  %v64 = vpop.permute.xlu0 %63
  %vm65 = vcmask 15360
  %s66 = scalar_lea.vmem %s1, 2
  %67 = vst.msk [vmem:[%s66] ss:$8 sm:$0xf] %vm65, %v64
  %s68 = scalar_lea.vmem %s1, 2
  %69 = vst.msk [vmem:[%s68] ss:$8 sm:$0xf0] %vm65, %v64
  %s70 = scalar_lea.vmem %s0, 8
  %v71 = vld [vmem:[%s70] sm:$0xff]
  %72 = vrot.lane.b32.xlu0 %v71, 124
  %v73 = vpop.permute.xlu0 %72
  %vm74 = vcmask 15360
  %s75 = scalar_lea.vmem %s1, 66
  %76 = vst.msk [vmem:[%s75] ss:$8 sm:$0xf] %vm74, %v73
  %s77 = scalar_lea.vmem %s1, 66
  %78 = vst.msk [vmem:[%s77] ss:$8 sm:$0xf0] %vm74, %v73
  %s79 = scalar_lea.vmem %s0, 16
  %v80 = vld [vmem:[%s79] sm:$0xff]
  %81 = vrot.lane.b32.xlu0 %v80, 124
  %v82 = vpop.permute.xlu0 %81
  %vm83 = vcmask 15360
  %s84 = scalar_lea.vmem %s1, 130
  %85 = vst.msk [vmem:[%s84] ss:$8 sm:$0xf] %vm83, %v82
  %s86 = scalar_lea.vmem %s1, 130
  %87 = vst.msk [vmem:[%s86] ss:$8 sm:$0xf0] %vm83, %v82
  %s88 = scalar_lea.vmem %s0, 24
  %v89 = vld [vmem:[%s88] sm:$0xff]
  %90 = vrot.lane.b32.xlu0 %v89, 124
  %v91 = vpop.permute.xlu0 %90
  %vm92 = vcmask 15360
  %s93 = scalar_lea.vmem %s1, 194
  %94 = vst.msk [vmem:[%s93] ss:$8 sm:$0xf] %vm92, %v91
  %s95 = scalar_lea.vmem %s1, 194
  %96 = vst.msk [vmem:[%s95] ss:$8 sm:$0xf0] %vm92, %v91
  %v97 = vld [vmem:[%s0] sm:$0xff]
  %98 = vrot.lane.b32.xlu0 %v97, 122
  %v99 = vpop.permute.xlu0 %98
  %vm100 = vcmask 15360
  %s101 = scalar_lea.vmem %s1, 3
  %102 = vst.msk [vmem:[%s101] ss:$8 sm:$0xf] %vm100, %v99
  %s103 = scalar_lea.vmem %s1, 3
  %104 = vst.msk [vmem:[%s103] ss:$8 sm:$0xf0] %vm100, %v99
  %s105 = scalar_lea.vmem %s0, 8
  %v106 = vld [vmem:[%s105] sm:$0xff]
  %107 = vrot.lane.b32.xlu0 %v106, 122
  %v108 = vpop.permute.xlu0 %107
  %vm109 = vcmask 15360
  %s110 = scalar_lea.vmem %s1, 67
  %111 = vst.msk [vmem:[%s110] ss:$8 sm:$0xf] %vm109, %v108
  %s112 = scalar_lea.vmem %s1, 67
  %113 = vst.msk [vmem:[%s112] ss:$8 sm:$0xf0] %vm109, %v108
  %s114 = scalar_lea.vmem %s0, 16
  %v115 = vld [vmem:[%s114] sm:$0xff]
  %116 = vrot.lane.b32.xlu0 %v115, 122
  %v117 = vpop.permute.xlu0 %116
  %vm118 = vcmask 15360
  %s119 = scalar_lea.vmem %s1, 131
  %120 = vst.msk [vmem:[%s119] ss:$8 sm:$0xf] %vm118, %v117
  %s121 = scalar_lea.vmem %s1, 131
  %122 = vst.msk [vmem:[%s121] ss:$8 sm:$0xf0] %vm118, %v117
  %s123 = scalar_lea.vmem %s0, 24
  %v124 = vld [vmem:[%s123] sm:$0xff]
  %125 = vrot.lane.b32.xlu0 %v124, 122
  %v126 = vpop.permute.xlu0 %125
  %vm127 = vcmask 15360
  %s128 = scalar_lea.vmem %s1, 195
  %129 = vst.msk [vmem:[%s128] ss:$8 sm:$0xf] %vm127, %v126
  %s130 = scalar_lea.vmem %s1, 195
  %131 = vst.msk [vmem:[%s130] ss:$8 sm:$0xf0] %vm127, %v126
  %v132 = vld [vmem:[%s0] sm:$0xff]
  %133 = vrot.lane.b32.xlu0 %v132, 120
  %v134 = vpop.permute.xlu0 %133
  %vm135 = vcmask 15360
  %s136 = scalar_lea.vmem %s1, 4
  %137 = vst.msk [vmem:[%s136] ss:$8 sm:$0xf] %vm135, %v134
  %s138 = scalar_lea.vmem %s1, 4
  %139 = vst.msk [vmem:[%s138] ss:$8 sm:$0xf0] %vm135, %v134
  %s140 = scalar_lea.vmem %s0, 8
  %v141 = vld [vmem:[%s140] sm:$0xff]
  %142 = vrot.lane.b32.xlu0 %v141, 120
  %v143 = vpop.permute.xlu0 %142
  %vm144 = vcmask 15360
  %s145 = scalar_lea.vmem %s1, 68
  %146 = vst.msk [vmem:[%s145] ss:$8 sm:$0xf] %vm144, %v143
  %s147 = scalar_lea.vmem %s1, 68
  %148 = vst.msk [vmem:[%s147] ss:$8 sm:$0xf0] %vm144, %v143
  %s149 = scalar_lea.vmem %s0, 16
  %v150 = vld [vmem:[%s149] sm:$0xff]
  %151 = vrot.lane.b32.xlu0 %v150, 120
  %v152 = vpop.permute.xlu0 %151
  %vm153 = vcmask 15360
  %s154 = scalar_lea.vmem %s1, 132
  %155 = vst.msk [vmem:[%s154] ss:$8 sm:$0xf] %vm153, %v152
  %s156 = scalar_lea.vmem %s1, 132
  %157 = vst.msk [vmem:[%s156] ss:$8 sm:$0xf0] %vm153, %v152
  %s158 = scalar_lea.vmem %s0, 24
  %v159 = vld [vmem:[%s158] sm:$0xff]
  %160 = vrot.lane.b32.xlu0 %v159, 120
  %v161 = vpop.permute.xlu0 %160
  %vm162 = vcmask 15360
  %s163 = scalar_lea.vmem %s1, 196
  %164 = vst.msk [vmem:[%s163] ss:$8 sm:$0xf] %vm162, %v161
  %s165 = scalar_lea.vmem %s1, 196
  %166 = vst.msk [vmem:[%s165] ss:$8 sm:$0xf0] %vm162, %v161
  %v167 = vld [vmem:[%s0] sm:$0xff]
  %168 = vrot.lane.b32.xlu0 %v167, 118
  %v169 = vpop.permute.xlu0 %168
  %vm170 = vcmask 15360
  %s171 = scalar_lea.vmem %s1, 5
  %172 = vst.msk [vmem:[%s171] ss:$8 sm:$0xf] %vm170, %v169
  %s173 = scalar_lea.vmem %s1, 5
  %174 = vst.msk [vmem:[%s173] ss:$8 sm:$0xf0] %vm170, %v169
  %s175 = scalar_lea.vmem %s0, 8
  %v176 = vld [vmem:[%s175] sm:$0xff]
  %177 = vrot.lane.b32.xlu0 %v176, 118
  %v178 = vpop.permute.xlu0 %177
  %vm179 = vcmask 15360
  %s180 = scalar_lea.vmem %s1, 69
  %181 = vst.msk [vmem:[%s180] ss:$8 sm:$0xf] %vm179, %v178
  %s182 = scalar_lea.vmem %s1, 69
  %183 = vst.msk [vmem:[%s182] ss:$8 sm:$0xf0] %vm179, %v178
  %s184 = scalar_lea.vmem %s0, 16
  %v185 = vld [vmem:[%s184] sm:$0xff]
  %186 = vrot.lane.b32.xlu0 %v185, 118
  %v187 = vpop.permute.xlu0 %186
  %vm188 = vcmask 15360
  %s189 = scalar_lea.vmem %s1, 133
  %190 = vst.msk [vmem:[%s189] ss:$8 sm:$0xf] %vm188, %v187
  %s191 = scalar_lea.vmem %s1, 133
  %192 = vst.msk [vmem:[%s191] ss:$8 sm:$0xf0] %vm188, %v187
  %s193 = scalar_lea.vmem %s0, 24
  %v194 = vld [vmem:[%s193] sm:$0xff]
  %195 = vrot.lane.b32.xlu0 %v194, 118
  %v196 = vpop.permute.xlu0 %195
  %vm197 = vcmask 15360
  %s198 = scalar_lea.vmem %s1, 197
  %199 = vst.msk [vmem:[%s198] ss:$8 sm:$0xf] %vm197, %v196
  %s200 = scalar_lea.vmem %s1, 197
  %201 = vst.msk [vmem:[%s200] ss:$8 sm:$0xf0] %vm197, %v196
  %v202 = vld [vmem:[%s0] sm:$0xff]
  %203 = vrot.lane.b32.xlu0 %v202, 116
  %v204 = vpop.permute.xlu0 %203
  %vm205 = vcmask 15360
  %s206 = scalar_lea.vmem %s1, 6
  %207 = vst.msk [vmem:[%s206] ss:$8 sm:$0xf] %vm205, %v204
  %s208 = scalar_lea.vmem %s1, 6
  %209 = vst.msk [vmem:[%s208] ss:$8 sm:$0xf0] %vm205, %v204
  %s210 = scalar_lea.vmem %s0, 8
  %v211 = vld [vmem:[%s210] sm:$0xff]
  %212 = vrot.lane.b32.xlu0 %v211, 116
  %v213 = vpop.permute.xlu0 %212
  %vm214 = vcmask 15360
  %s215 = scalar_lea.vmem %s1, 70
  %216 = vst.msk [vmem:[%s215] ss:$8 sm:$0xf] %vm214, %v213
  %s217 = scalar_lea.vmem %s1, 70
  %218 = vst.msk [vmem:[%s217] ss:$8 sm:$0xf0] %vm214, %v213
  %s219 = scalar_lea.vmem %s0, 16
  %v220 = vld [vmem:[%s219] sm:$0xff]
  %221 = vrot.lane.b32.xlu0 %v220, 116
  %v222 = vpop.permute.xlu0 %221
  %vm223 = vcmask 15360
  %s224 = scalar_lea.vmem %s1, 134
  %225 = vst.msk [vmem:[%s224] ss:$8 sm:$0xf] %vm223, %v222
  %s226 = scalar_lea.vmem %s1, 134
  %227 = vst.msk [vmem:[%s226] ss:$8 sm:$0xf0] %vm223, %v222
  %s228 = scalar_lea.vmem %s0, 24
  %v229 = vld [vmem:[%s228] sm:$0xff]
  %230 = vrot.lane.b32.xlu0 %v229, 116
  %v231 = vpop.permute.xlu0 %230
  %vm232 = vcmask 15360
  %s233 = scalar_lea.vmem %s1, 198
  %234 = vst.msk [vmem:[%s233] ss:$8 sm:$0xf] %vm232, %v231
  %s235 = scalar_lea.vmem %s1, 198
  %236 = vst.msk [vmem:[%s235] ss:$8 sm:$0xf0] %vm232, %v231
  %v237 = vld [vmem:[%s0] sm:$0xff]
  %238 = vrot.lane.b32.xlu0 %v237, 114
  %v239 = vpop.permute.xlu0 %238
  %vm240 = vcmask 15360
  %s241 = scalar_lea.vmem %s1, 7
  %242 = vst.msk [vmem:[%s241] ss:$8 sm:$0xf] %vm240, %v239
  %s243 = scalar_lea.vmem %s1, 7
  %244 = vst.msk [vmem:[%s243] ss:$8 sm:$0xf0] %vm240, %v239
  %s245 = scalar_lea.vmem %s0, 8
  %v246 = vld [vmem:[%s245] sm:$0xff]
  %247 = vrot.lane.b32.xlu0 %v246, 114
  %v248 = vpop.permute.xlu0 %247
  %vm249 = vcmask 15360
  %s250 = scalar_lea.vmem %s1, 71
  %251 = vst.msk [vmem:[%s250] ss:$8 sm:$0xf] %vm249, %v248
  %s252 = scalar_lea.vmem %s1, 71
  %253 = vst.msk [vmem:[%s252] ss:$8 sm:$0xf0] %vm249, %v248
  %s254 = scalar_lea.vmem %s0, 16
  %v255 = vld [vmem:[%s254] sm:$0xff]
  %256 = vrot.lane.b32.xlu0 %v255, 114
  %v257 = vpop.permute.xlu0 %256
  %vm258 = vcmask 15360
  %s259 = scalar_lea.vmem %s1, 135
  %260 = vst.msk [vmem:[%s259] ss:$8 sm:$0xf] %vm258, %v257
  %s261 = scalar_lea.vmem %s1, 135
  %262 = vst.msk [vmem:[%s261] ss:$8 sm:$0xf0] %vm258, %v257
  %s263 = scalar_lea.vmem %s0, 24
  %v264 = vld [vmem:[%s263] sm:$0xff]
  %265 = vrot.lane.b32.xlu0 %v264, 114
  %v266 = vpop.permute.xlu0 %265
  %vm267 = vcmask 15360
  %s268 = scalar_lea.vmem %s1, 199
  %269 = vst.msk [vmem:[%s268] ss:$8 sm:$0xf] %vm267, %v266
  %s270 = scalar_lea.vmem %s1, 199
  %271 = vst.msk [vmem:[%s270] ss:$8 sm:$0xf0] %vm267, %v266

// kernel: conv2d_s2_k3_nhwc.1
$region0: #{conv2d_s2_k3_nhwc.1}
  #allocation0 [shape = 'u32[]', space=smem, size = 0x4, offset = 0x4, fixed_abs, tag = 'smem constant byte address 0x4 - core index']
  #allocation1 [shape = 'u32[144,128]{1,0:T(1,128)}', space=vmem, size = 0x12000, scoped, tag = 'internal scratch']
  %s0 = inlined_call_operand.vmem [shape: f32[1,4,256], index: 0, kind: input, shape index: {}]
  %s1 = inlined_call_operand.vmem [shape: f32[32,9], index: 1, kind: input, shape index: {}]
  %s2 = inlined_call_operand.vmem [shape: f32[32,1], index: 2, kind: input, shape index: {}]
  %s3 = inlined_call_operand.vmem [shape: f32[32,128], index: 3, kind: output, shape index: {}]
  %s4 = sld [smem:[#allocation0]]
  $region22: #{conv2d_s2_k3_nhwc.1} parent=0
    _
  %s6 = ssub.s32 1, %s4
  %s7 = scalar_select 0, %s6, %s4
  // Predicated region
  $region2: #{conv2d_s2_k3_nhwc.1} parent=0 // pred_check
    _
  $region3: #{conv2d_s2_k3_nhwc.1} parent=0 // pred_check_branch
    %9 = sbr.rel (0) target = $region5
  $region4: #{conv2d_s2_k3_nhwc.1} parent=0 // pred_region
    _
  $region5: #{conv2d_s2_k3_nhwc.1} parent=0 // pred_fallthru
    _
  // Predicated region
  $region6: #{conv2d_s2_k3_nhwc.1} parent=0 // pred_check
    _
  $region7: #{conv2d_s2_k3_nhwc.1} parent=0 // pred_check_branch
    %11 = sbr.rel (0) target = $region9
  $region8: #{conv2d_s2_k3_nhwc.1} parent=0 // pred_region
    _
  $region9: #{conv2d_s2_k3_nhwc.1} parent=0 // pred_fallthru
    _
  // Predicated region
  $region10: #{conv2d_s2_k3_nhwc.1} parent=0 // pred_check
    _
  $region11: #{conv2d_s2_k3_nhwc.1} parent=0 // pred_check_branch
    %13 = sbr.rel (0) target = $region13
  $region12: #{conv2d_s2_k3_nhwc.1} parent=0 // pred_region
    _
  $region13: #{conv2d_s2_k3_nhwc.1} parent=0 // pred_fallthru
    _
  %v14 = vld [vmem:[%s1] sm:$0xff]
  %v15 = vld [vmem:[%s1 + $0x8] sm:$0xff]
  %v16 = vld [vmem:[%s1 + $0x10] sm:$0xff]
  %v17 = vld [vmem:[%s1 + $0x18] sm:$0xff]
  %19 = vset.pattern.permute.xlu0 0
  %20 = vperm.xlu0 %19, %v14
  %v21 = vpop.permute.xlu0 %20
  %24 = vset.pattern.permute.xlu0 0
  %25 = vperm.xlu0 %24, %v15
  %v26 = vpop.permute.xlu0 %25
  %29 = vset.pattern.permute.xlu0 0
  %30 = vperm.xlu0 %29, %v16
  %v31 = vpop.permute.xlu0 %30
  %34 = vset.pattern.permute.xlu0 0
  %35 = vperm.xlu0 %34, %v17
  %v36 = vpop.permute.xlu0 %35
  %38 = vset.pattern.permute.xlu0 1
  %39 = vperm.xlu0 %38, %v14
  %v40 = vpop.permute.xlu0 %39
  %42 = vset.pattern.permute.xlu0 1
  %43 = vperm.xlu0 %42, %v15
  %v44 = vpop.permute.xlu0 %43
  %46 = vset.pattern.permute.xlu0 1
  %47 = vperm.xlu0 %46, %v16
  %v48 = vpop.permute.xlu0 %47
  %50 = vset.pattern.permute.xlu0 1
  %51 = vperm.xlu0 %50, %v17
  %v52 = vpop.permute.xlu0 %51
  %54 = vset.pattern.permute.xlu0 2
  %55 = vperm.xlu0 %54, %v14
  %v56 = vpop.permute.xlu0 %55
  %58 = vset.pattern.permute.xlu0 2
  %59 = vperm.xlu0 %58, %v15
  %v60 = vpop.permute.xlu0 %59
  %62 = vset.pattern.permute.xlu0 2
  %63 = vperm.xlu0 %62, %v16
  %v64 = vpop.permute.xlu0 %63
  %66 = vset.pattern.permute.xlu0 2
  %67 = vperm.xlu0 %66, %v17
  %v68 = vpop.permute.xlu0 %67
  %70 = vset.pattern.permute.xlu0 3
  %71 = vperm.xlu0 %70, %v14
  %v72 = vpop.permute.xlu0 %71
  %74 = vset.pattern.permute.xlu0 3
  %75 = vperm.xlu0 %74, %v15
  %v76 = vpop.permute.xlu0 %75
  %78 = vset.pattern.permute.xlu0 3
  %79 = vperm.xlu0 %78, %v16
  %v80 = vpop.permute.xlu0 %79
  %82 = vset.pattern.permute.xlu0 3
  %83 = vperm.xlu0 %82, %v17
  %v84 = vpop.permute.xlu0 %83
  %86 = vset.pattern.permute.xlu0 4
  %87 = vperm.xlu0 %86, %v14
  %v88 = vpop.permute.xlu0 %87
  %90 = vset.pattern.permute.xlu0 4
  %91 = vperm.xlu0 %90, %v15
  %v92 = vpop.permute.xlu0 %91
  %94 = vset.pattern.permute.xlu0 4
  %95 = vperm.xlu0 %94, %v16
  %v96 = vpop.permute.xlu0 %95
  %98 = vset.pattern.permute.xlu0 4
  %99 = vperm.xlu0 %98, %v17
  %v100 = vpop.permute.xlu0 %99
  %102 = vset.pattern.permute.xlu0 5
  %103 = vperm.xlu0 %102, %v14
  %v104 = vpop.permute.xlu0 %103
  %106 = vset.pattern.permute.xlu0 5
  %107 = vperm.xlu0 %106, %v15
  %v108 = vpop.permute.xlu0 %107
  %110 = vset.pattern.permute.xlu0 5
  %111 = vperm.xlu0 %110, %v16
  %v112 = vpop.permute.xlu0 %111
  %114 = vset.pattern.permute.xlu0 5
  %115 = vperm.xlu0 %114, %v17
  %v116 = vpop.permute.xlu0 %115
  %118 = vset.pattern.permute.xlu0 6
  %119 = vperm.xlu0 %118, %v14
  %v120 = vpop.permute.xlu0 %119
  %122 = vset.pattern.permute.xlu0 6
  %123 = vperm.xlu0 %122, %v15
  %v124 = vpop.permute.xlu0 %123
  %126 = vset.pattern.permute.xlu0 6
  %127 = vperm.xlu0 %126, %v16
  %v128 = vpop.permute.xlu0 %127
  %130 = vset.pattern.permute.xlu0 6
  %131 = vperm.xlu0 %130, %v17
  %v132 = vpop.permute.xlu0 %131
  %134 = vset.pattern.permute.xlu0 7
  %135 = vperm.xlu0 %134, %v14
  %v136 = vpop.permute.xlu0 %135
  %138 = vset.pattern.permute.xlu0 7
  %139 = vperm.xlu0 %138, %v15
  %v140 = vpop.permute.xlu0 %139
  %142 = vset.pattern.permute.xlu0 7
  %143 = vperm.xlu0 %142, %v16
  %v144 = vpop.permute.xlu0 %143
  %146 = vset.pattern.permute.xlu0 7
  %147 = vperm.xlu0 %146, %v17
  %v148 = vpop.permute.xlu0 %147
  %150 = vset.pattern.permute.xlu0 8
  %151 = vperm.xlu0 %150, %v14
  %v152 = vpop.permute.xlu0 %151
  %154 = vset.pattern.permute.xlu0 8
  %155 = vperm.xlu0 %154, %v15
  %v156 = vpop.permute.xlu0 %155
  %158 = vset.pattern.permute.xlu0 8
  %159 = vperm.xlu0 %158, %v16
  %v160 = vpop.permute.xlu0 %159
  %162 = vset.pattern.permute.xlu0 8
  %163 = vperm.xlu0 %162, %v17
  %v164 = vpop.permute.xlu0 %163
  %v166 = vld [vmem:[%s2] sm:$0xff]
  %v167 = vld [vmem:[%s2 + $0x8] sm:$0xff]
  %v168 = vld [vmem:[%s2 + $0x10] sm:$0xff]
  %v169 = vld [vmem:[%s2 + $0x18] sm:$0xff]
  %171 = vset.pattern.permute.xlu0 0
  %172 = vperm.xlu0 %171, %v166
  %v173 = vpop.permute.xlu0 %172
  %176 = vset.pattern.permute.xlu0 0
  %177 = vperm.xlu0 %176, %v167
  %v178 = vpop.permute.xlu0 %177
  %181 = vset.pattern.permute.xlu0 0
  %182 = vperm.xlu0 %181, %v168
  %v183 = vpop.permute.xlu0 %182
  %186 = vset.pattern.permute.xlu0 0
  %187 = vperm.xlu0 %186, %v169
  %v188 = vpop.permute.xlu0 %187
  %v190 = vld [vmem:[%s0] sm:$0x1]
  %v191 = vlaneseq
  %v192 = vshrl.u32 %v191, 7
  %v193 = vsub.s32 0, %v192
  %v194 = vrot.slane %v190, %v193
  %v195 = vmul.f32 %v21, %v194
  %v196 = vmul.f32 %v26, %v194
  %v197 = vmul.f32 %v31, %v194
  %v198 = vmul.f32 %v36, %v194
  %v199 = vadd.f32 %v173, %v195
  %v200 = vadd.f32 %v178, %v196
  %v201 = vadd.f32 %v183, %v197
  %v202 = vadd.f32 %v188, %v198
  %v203 = vld [vmem:[%s0 + $0x1] sm:$0x1]
  %v204 = vlaneseq
  %v205 = vshrl.u32 %v204, 7
  %v206 = vsub.s32 0, %v205
  %v207 = vrot.slane %v203, %v206
  %v208 = vmul.f32 %v40, %v207
  %v209 = vmul.f32 %v44, %v207
  %v210 = vmul.f32 %v48, %v207
  %v211 = vmul.f32 %v52, %v207
  %v212 = vadd.f32 %v199, %v208
  %v213 = vadd.f32 %v200, %v209
  %v214 = vadd.f32 %v201, %v210
  %v215 = vadd.f32 %v202, %v211
  %v216 = vld [vmem:[%s0] sm:$0x11]
  %v218 = vlaneseq
  %v219 = vshrl.u32 %v218, 7
  %v220 = vsub.s32 0, %v219
  %v221 = vrot.slane %v216, %v220
  %v222 = vlaneseq
  %v223 = vshrl.u32 %v222, 7
  %v224 = vsub.s32 4, %v223
  %v225 = vrot.slane %v216, %v224
  %v228 = vlaneseq
  %v229 = vshrl.u32 %v228, 7
  %v230 = vsub.s32 0, %v229
  %v231 = vrot.slane %v221, %v230
  %v232 = vlaneseq
  %v233 = vshrl.u32 %v232, 7
  %v234 = vsub.s32 0, %v233
  %v235 = vrot.slane %v225, %v234
  %v236 = vmul.f32 %v56, %v231
  %v237 = vmul.f32 %v56, %v235
  %v238 = vmul.f32 %v60, %v231
  %v239 = vmul.f32 %v60, %v235
  %v240 = vmul.f32 %v64, %v231
  %v241 = vmul.f32 %v64, %v235
  %v242 = vmul.f32 %v68, %v231
  %v243 = vmul.f32 %v68, %v235
  %252 = vrot.lane.b32.xlu0 %v236, 127
  %v253 = vpop.permute.xlu0 %252
  %254 = vrot.lane.b32.xlu0 %v237, 127
  %v255 = vpop.permute.xlu0 %254
  %256 = vrot.lane.b32.xlu0 %v238, 127
  %v257 = vpop.permute.xlu0 %256
  %258 = vrot.lane.b32.xlu0 %v239, 127
  %v259 = vpop.permute.xlu0 %258
  %260 = vrot.lane.b32.xlu0 %v240, 127
  %v261 = vpop.permute.xlu0 %260
  %262 = vrot.lane.b32.xlu0 %v241, 127
  %v263 = vpop.permute.xlu0 %262
  %264 = vrot.lane.b32.xlu0 %v242, 127
  %v265 = vpop.permute.xlu0 %264
  %266 = vrot.lane.b32.xlu0 %v243, 127
  %v267 = vpop.permute.xlu0 %266
  %vm268 = vcmask 1039360
  %v269 = vsel %vm268, %v253, %v255
  %v270 = vsel %vm268, %v257, %v259
  %v271 = vsel %vm268, %v261, %v263
  %v272 = vsel %vm268, %v265, %v267
  %v277 = vadd.f32 %v212, %v269
  %v278 = vadd.f32 %v213, %v270
  %v279 = vadd.f32 %v214, %v271
  %v280 = vadd.f32 %v215, %v272
  %v281 = vld [vmem:[%s0 + $0x2] sm:$0x1]
  %v282 = vlaneseq
  %v283 = vshrl.u32 %v282, 7
  %v284 = vsub.s32 0, %v283
  %v285 = vrot.slane %v281, %v284
  %v286 = vmul.f32 %v72, %v285
  %v287 = vmul.f32 %v76, %v285
  %v288 = vmul.f32 %v80, %v285
  %v289 = vmul.f32 %v84, %v285
  %v290 = vld [vmem:[%s0 + $0x3] sm:$0x1]
  %v291 = vlaneseq
  %v292 = vshrl.u32 %v291, 7
  %v293 = vsub.s32 0, %v292
  %v294 = vrot.slane %v290, %v293
  %v295 = vmul.f32 %v88, %v294
  %v296 = vmul.f32 %v92, %v294
  %v297 = vmul.f32 %v96, %v294
  %v298 = vmul.f32 %v100, %v294
  %v299 = vadd.f32 %v286, %v295
  %v300 = vadd.f32 %v287, %v296
  %v301 = vadd.f32 %v288, %v297
  %v302 = vadd.f32 %v289, %v298
  %v303 = vld [vmem:[%s0 + $0x2] sm:$0x11]
  %v305 = vlaneseq
  %v306 = vshrl.u32 %v305, 7
  %v307 = vsub.s32 0, %v306
  %v308 = vrot.slane %v303, %v307
  %v309 = vlaneseq
  %v310 = vshrl.u32 %v309, 7
  %v311 = vsub.s32 4, %v310
  %v312 = vrot.slane %v303, %v311
  %v315 = vlaneseq
  %v316 = vshrl.u32 %v315, 7
  %v317 = vsub.s32 0, %v316
  %v318 = vrot.slane %v308, %v317
  %v319 = vlaneseq
  %v320 = vshrl.u32 %v319, 7
  %v321 = vsub.s32 0, %v320
  %v322 = vrot.slane %v312, %v321
  %v323 = vmul.f32 %v104, %v318
  %v324 = vmul.f32 %v104, %v322
  %v325 = vmul.f32 %v108, %v318
  %v326 = vmul.f32 %v108, %v322
  %v327 = vmul.f32 %v112, %v318
  %v328 = vmul.f32 %v112, %v322
  %v329 = vmul.f32 %v116, %v318
  %v330 = vmul.f32 %v116, %v322
  %339 = vrot.lane.b32.xlu0 %v323, 127
  %v340 = vpop.permute.xlu0 %339
  %341 = vrot.lane.b32.xlu0 %v324, 127
  %v342 = vpop.permute.xlu0 %341
  %343 = vrot.lane.b32.xlu0 %v325, 127
  %v344 = vpop.permute.xlu0 %343
  %345 = vrot.lane.b32.xlu0 %v326, 127
  %v346 = vpop.permute.xlu0 %345
  %347 = vrot.lane.b32.xlu0 %v327, 127
  %v348 = vpop.permute.xlu0 %347
  %349 = vrot.lane.b32.xlu0 %v328, 127
  %v350 = vpop.permute.xlu0 %349
  %351 = vrot.lane.b32.xlu0 %v329, 127
  %v352 = vpop.permute.xlu0 %351
  %353 = vrot.lane.b32.xlu0 %v330, 127
  %v354 = vpop.permute.xlu0 %353
  %v355 = vsel %vm268, %v340, %v342
  %v356 = vsel %vm268, %v344, %v346
  %v357 = vsel %vm268, %v348, %v350
  %v358 = vsel %vm268, %v352, %v354
  %v363 = vadd.f32 %v299, %v355
  %v364 = vadd.f32 %v300, %v356
  %v365 = vadd.f32 %v301, %v357
  %v366 = vadd.f32 %v302, %v358
  %v367 = vmul.f32 %v120, %v231
  %v368 = vmul.f32 %v120, %v235
  %v369 = vmul.f32 %v124, %v231
  %v370 = vmul.f32 %v124, %v235
  %v371 = vmul.f32 %v128, %v231
  %v372 = vmul.f32 %v128, %v235
  %v373 = vmul.f32 %v132, %v231
  %v374 = vmul.f32 %v132, %v235
  %v375 = vld [vmem:[%s0 + $0x1] sm:$0x11]
  %v377 = vlaneseq
  %v378 = vshrl.u32 %v377, 7
  %v379 = vsub.s32 0, %v378
  %v380 = vrot.slane %v375, %v379
  %v381 = vlaneseq
  %v382 = vshrl.u32 %v381, 7
  %v383 = vsub.s32 4, %v382
  %v384 = vrot.slane %v375, %v383
  %v387 = vlaneseq
  %v388 = vshrl.u32 %v387, 7
  %v389 = vsub.s32 0, %v388
  %v390 = vrot.slane %v380, %v389
  %v391 = vlaneseq
  %v392 = vshrl.u32 %v391, 7
  %v393 = vsub.s32 0, %v392
  %v394 = vrot.slane %v384, %v393
  %v395 = vmul.f32 %v136, %v390
  %v396 = vmul.f32 %v136, %v394
  %v397 = vmul.f32 %v140, %v390
  %v398 = vmul.f32 %v140, %v394
  %v399 = vmul.f32 %v144, %v390
  %v400 = vmul.f32 %v144, %v394
  %v401 = vmul.f32 %v148, %v390
  %v402 = vmul.f32 %v148, %v394
  %v403 = vadd.f32 %v367, %v395
  %v404 = vadd.f32 %v368, %v396
  %v405 = vadd.f32 %v369, %v397
  %v406 = vadd.f32 %v370, %v398
  %v407 = vadd.f32 %v371, %v399
  %v408 = vadd.f32 %v372, %v400
  %v409 = vadd.f32 %v373, %v401
  %v410 = vadd.f32 %v374, %v402
  %v411 = vmul.f32 %v152, %v231
  %v412 = vmul.f32 %v152, %v235
  %v413 = vmul.f32 %v156, %v231
  %v414 = vmul.f32 %v156, %v235
  %v415 = vmul.f32 %v160, %v231
  %v416 = vmul.f32 %v160, %v235
  %v417 = vmul.f32 %v164, %v231
  %v418 = vmul.f32 %v164, %v235
  %427 = vrot.lane.b32.xlu0 %v411, 127
  %v428 = vpop.permute.xlu0 %427
  %429 = vrot.lane.b32.xlu0 %v412, 127
  %v430 = vpop.permute.xlu0 %429
  %431 = vrot.lane.b32.xlu0 %v413, 127
  %v432 = vpop.permute.xlu0 %431
  %433 = vrot.lane.b32.xlu0 %v414, 127
  %v434 = vpop.permute.xlu0 %433
  %435 = vrot.lane.b32.xlu0 %v415, 127
  %v436 = vpop.permute.xlu0 %435
  %437 = vrot.lane.b32.xlu0 %v416, 127
  %v438 = vpop.permute.xlu0 %437
  %439 = vrot.lane.b32.xlu0 %v417, 127
  %v440 = vpop.permute.xlu0 %439
  %441 = vrot.lane.b32.xlu0 %v418, 127
  %v442 = vpop.permute.xlu0 %441
  %v443 = vsel %vm268, %v428, %v430
  %v444 = vsel %vm268, %v432, %v434
  %v445 = vsel %vm268, %v436, %v438
  %v446 = vsel %vm268, %v440, %v442
  %v455 = vadd.f32 %v403, %v443
  %v456 = vadd.f32 %v404, %v430
  %v457 = vadd.f32 %v405, %v444
  %v458 = vadd.f32 %v406, %v434
  %v459 = vadd.f32 %v407, %v445
  %v460 = vadd.f32 %v408, %v438
  %v461 = vadd.f32 %v409, %v446
  %v462 = vadd.f32 %v410, %v442
  %471 = vrot.lane.b32.xlu0 %v455, 120
  %v472 = vpop.permute.xlu0 %471
  %473 = vrot.lane.b32.xlu0 %v456, 120
  %v474 = vpop.permute.xlu0 %473
  %475 = vrot.lane.b32.xlu0 %v457, 120
  %v476 = vpop.permute.xlu0 %475
  %477 = vrot.lane.b32.xlu0 %v458, 120
  %v478 = vpop.permute.xlu0 %477
  %479 = vrot.lane.b32.xlu0 %v459, 120
  %v480 = vpop.permute.xlu0 %479
  %481 = vrot.lane.b32.xlu0 %v460, 120
  %v482 = vpop.permute.xlu0 %481
  %483 = vrot.lane.b32.xlu0 %v461, 120
  %v484 = vpop.permute.xlu0 %483
  %485 = vrot.lane.b32.xlu0 %v462, 120
  %v486 = vpop.permute.xlu0 %485
  %vm487 = vcmask 982016
  %v488 = vsel %vm487, %v472, %v474
  %v489 = vsel %vm487, %v476, %v478
  %v490 = vsel %vm487, %v480, %v482
  %v491 = vsel %vm487, %v484, %v486
  %v496 = vadd.f32 %v363, %v488
  %v497 = vadd.f32 %v364, %v489
  %v498 = vadd.f32 %v365, %v490
  %v499 = vadd.f32 %v366, %v491
  %v500 = vadd.f32 %v277, %v496
  %v501 = vadd.f32 %v278, %v497
  %v502 = vadd.f32 %v279, %v498
  %v503 = vadd.f32 %v280, %v499
  %504 = vst [vmem:[%s3] sm:$0xff] %v500
  %505 = vst [vmem:[%s3 + $0x8] sm:$0xff] %v501
  %506 = vst [vmem:[%s3 + $0x10] sm:$0xff] %v502
  %507 = vst [vmem:[%s3 + $0x18] sm:$0xff] %v503
  // Predicated region
  $region14: #{conv2d_s2_k3_nhwc.1} parent=0 // pred_check
    _
  $region15: #{conv2d_s2_k3_nhwc.1} parent=0 // pred_check_branch
    %509 = sbr.rel (0) target = $region17
  $region16: #{conv2d_s2_k3_nhwc.1} parent=0 // pred_region
    _
  $region17: #{conv2d_s2_k3_nhwc.1} parent=0 // pred_fallthru
    _
  // Predicated region
  $region18: #{conv2d_s2_k3_nhwc.1} parent=0 // pred_check
    _
  $region19: #{conv2d_s2_k3_nhwc.1} parent=0 // pred_check_branch
    %511 = sbr.rel (0) target = $region21
  $region20: #{conv2d_s2_k3_nhwc.1} parent=0 // pred_region
    _
  $region21: #{conv2d_s2_k3_nhwc.1} parent=0 // pred_fallthru
    _

</llo_original>
